<compile_context>
chip_gen: v5e
topology: v5e:2x2
jax: 0.10.0
libtpu: 0.0.40
codegen_flags: <defaults>
</compile_context>

<pallas_src>
import jax
import jax.numpy as jnp
from jax.experimental import pallas as pl
from jax.experimental.pallas import tpu as pltpu


def _policy_kernel(x_ref, w1b_ref, whb_ref, out_ref):
    B, S = x_ref.shape                   # (tile_b, state_dim)
    H = w1b_ref.shape[1]                 # hidden_dim
    A2 = out_ref.shape[1]                # 2 * action_dim
    A = A2 // 2

    x = x_ref[...]                       # [B, S]
    w1b = w1b_ref[...]                   # [S+1, H]: rows 0..S-1 = w1, row S = b1
    whb = whb_ref[...]                   # [H+1, 2A]: rows 0..H-1 = [w_mu|w_std], row H = [b_mu|b_std]

    # fc1 on the VPU: K = S is tiny, so S broadcast multiply-adds beat a full MXU pass.
    h = jnp.broadcast_to(w1b[S:S + 1, :], (B, H))           # start from the bias row
    for s in range(S):                                       # static, fully unrolled
        h = h + x[:, s:s + 1] * w1b[s:s + 1, :]
    h = jnp.maximum(h, 0.0)                                  # ReLU

    # Fused heads: single [B,H] x [H,2A] MXU matmul + bias row broadcast.
    heads = jnp.dot(h, whb[0:H, :], preferred_element_type=jnp.float32)
    heads = heads + whb[H:H + 1, :]

    # mu = 2*tanh in lanes [0, A), std = softplus (stable form) in lanes [A, 2A).
    lane = jax.lax.broadcasted_iota(jnp.int32, (B, A2), 1)
    mu = 2.0 * jnp.tanh(heads)
    std = jnp.maximum(heads, 0.0) + jnp.log1p(jnp.exp(-jnp.abs(heads)))
    out_ref[...] = jnp.where(lane < A, mu, std)


def policy_net_continuous(x, w1, b1, w_mu, b_mu, w_std, b_std, *, tile_b=512):
    """Full forward pass in one fused Pallas kernel.

    Weights are pre-transposed relative to torch: w* are [in, out], biases [1, out].
    Returns (mu, std), each [B, action_dim].
    """
    B, S = x.shape
    H = w1.shape[1]
    A = w_mu.shape[1]
    A2 = 2 * A

    # Pack parameters -> fewer, denser input DMAs.
    w1b = jnp.concatenate([w1, b1], axis=0).astype(jnp.float32)                  # [S+1, H]
    whb = jnp.concatenate(
        [jnp.concatenate([w_mu, w_std], axis=1),                                 # [H, 2A]
         jnp.concatenate([b_mu, b_std], axis=1)],                                # [1, 2A]
        axis=0).astype(jnp.float32)                                              # [H+1, 2A]
    x = x.astype(jnp.float32)

    # Batch tiling: weights stay VMEM-resident; batch axis is 'parallel'
    # (shards across the two TensorCores on v7x; no-op on v5e/v6e).
    tb = max(8, min(tile_b, B))
    tb = ((tb + 7) // 8) * 8
    bp = pl.cdiv(B, tb) * tb
    if bp != B:
        x = jnp.pad(x, ((0, bp - B), (0, 0)))
    grid = (bp // tb,)

    out = pl.pallas_call(
        _policy_kernel,
        out_shape=jax.ShapeDtypeStruct((bp, A2), jnp.float32),
        grid=grid,
        in_specs=[
            pl.BlockSpec((tb, S), lambda i: (i, 0)),        # x tile
            pl.BlockSpec((S + 1, H), lambda i: (0, 0)),     # w1|b1   (resident)
            pl.BlockSpec((H + 1, A2), lambda i: (0, 0)),    # heads W|b (resident)
        ],
        out_specs=pl.BlockSpec((tb, A2), lambda i: (i, 0)),
        compiler_params=pltpu.CompilerParams(
            dimension_semantics=("parallel",)),
    )(x, w1b, whb)

    mu = out[:B, :A]
    std = out[:B, A:]
    return mu, std


def _reference(x, w1, b1, w_mu, b_mu, w_std, b_std):
    hp = jax.lax.Precision.HIGHEST
    h = jax.nn.relu(jnp.dot(x, w1, precision=hp) + b1)
    mu = 2.0 * jnp.tanh(jnp.dot(h, w_mu, precision=hp) + b_mu)
    std = jax.nn.softplus(jnp.dot(h, w_std, precision=hp) + b_std)
    return mu, std


if __name__ == "__main__":
    # Pendulum-v1: state_dim=3, action_dim=1, hidden_dim=128
    state_dim, hidden_dim, action_dim = 3, 128, 1
    batch = 8

    key = jax.random.PRNGKey(0)
    k = jax.random.split(key, 7)

    # Deterministic synthetic parameters (stored as [in, out] — i.e. W^T of torch).
    x = jax.random.normal(k[0], (batch, state_dim), dtype=jnp.float32)
    w1 = jax.random.normal(k[1], (state_dim, hidden_dim), dtype=jnp.float32) * 0.1
    b1 = jax.random.normal(k[2], (1, hidden_dim), dtype=jnp.float32) * 0.1
    w_mu = jax.random.normal(k[3], (hidden_dim, action_dim), dtype=jnp.float32) * 0.1
    b_mu = jax.random.normal(k[4], (1, action_dim), dtype=jnp.float32) * 0.1
    w_std = jax.random.normal(k[5], (hidden_dim, action_dim), dtype=jnp.float32) * 0.1
    b_std = jax.random.normal(k[6], (1, action_dim), dtype=jnp.float32) * 0.1

    mu, std = policy_net_continuous(x, w1, b1, w_mu, b_mu, w_std, b_std)
    jax.block_until_ready((mu, std))

    mu_ref, std_ref = _reference(x, w1, b1, w_mu, b_mu, w_std, b_std)
    assert mu.shape == (batch, action_dim) and std.shape == (batch, action_dim)
    assert jnp.allclose(mu, mu_ref, atol=1e-4, rtol=1e-4), float(jnp.max(jnp.abs(mu - mu_ref)))
    assert jnp.allclose(std, std_ref, atol=1e-4, rtol=1e-4), float(jnp.max(jnp.abs(std - std_ref)))

    print("KERNEL_OK")
</pallas_src>

<mosaic_0001>
module attributes {stable_mosaic.version = 11 : i64} {
  func.func @_policy_kernel(%arg0: i32, %arg1: memref<8x3xf32, #tpu.memory_space<vmem>>, %arg2: memref<4x128xf32, #tpu.memory_space<vmem>>, %arg3: memref<129x2xf32, #tpu.memory_space<vmem>>, %arg4: memref<8x2xf32, #tpu.memory_space<vmem>>) attributes {dimension_semantics = [#tpu.dimension_semantics<parallel>], iteration_bounds = array<i64: 1>, scalar_prefetch = 0 : i64, scratch_operands = 0 : i64, tpu.core_type = #tpu.core_type<tc>, window_params = [{transform_indices = @transform_0, window_bounds = array<i64: 8, 3>}, {pipeline_mode = #tpu.pipeline_mode<synchronous>, transform_indices = @transform_1, window_bounds = array<i64: 4, 128>}, {pipeline_mode = #tpu.pipeline_mode<synchronous>, transform_indices = @transform_2, window_bounds = array<i64: 129, 2>}, {transform_indices = @transform_3, window_bounds = array<i64: 8, 2>}]} {
    %c0 = arith.constant 0 : index
    %c0_0 = arith.constant 0 : index
    %0 = vector.load %arg1[%c0, %c0_0] : memref<8x3xf32, #tpu.memory_space<vmem>>, vector<8x3xf32>
    %c0_1 = arith.constant 0 : index
    %c0_2 = arith.constant 0 : index
    %1 = vector.load %arg2[%c0_1, %c0_2] : memref<4x128xf32, #tpu.memory_space<vmem>>, vector<4x128xf32>
    %c0_3 = arith.constant 0 : index
    %c0_4 = arith.constant 0 : index
    %2 = vector.load %arg3[%c0_3, %c0_4] : memref<129x2xf32, #tpu.memory_space<vmem>>, vector<129x2xf32>
    %3 = vector.extract_strided_slice %1 {offsets = [3, 0], sizes = [1, 128], strides = [1, 1]} : vector<4x128xf32> to vector<1x128xf32>
    %4 = vector.shape_cast %3 : vector<1x128xf32> to vector<1x128xf32>
    %5 = vector.broadcast %4 : vector<1x128xf32> to vector<8x128xf32>
    %6 = vector.extract_strided_slice %0 {offsets = [0, 0], sizes = [8, 1], strides = [1, 1]} : vector<8x3xf32> to vector<8x1xf32>
    %7 = vector.extract_strided_slice %1 {offsets = [0, 0], sizes = [1, 128], strides = [1, 1]} : vector<4x128xf32> to vector<1x128xf32>
    %8 = vector.broadcast %6 : vector<8x1xf32> to vector<8x128xf32>
    %9 = vector.broadcast %7 : vector<1x128xf32> to vector<8x128xf32>
    %10 = arith.mulf %8, %9 : vector<8x128xf32>
    %11 = arith.addf %5, %10 : vector<8x128xf32>
    %12 = vector.extract_strided_slice %0 {offsets = [0, 1], sizes = [8, 1], strides = [1, 1]} : vector<8x3xf32> to vector<8x1xf32>
    %13 = vector.extract_strided_slice %1 {offsets = [1, 0], sizes = [1, 128], strides = [1, 1]} : vector<4x128xf32> to vector<1x128xf32>
    %14 = vector.broadcast %12 : vector<8x1xf32> to vector<8x128xf32>
    %15 = vector.broadcast %13 : vector<1x128xf32> to vector<8x128xf32>
    %16 = arith.mulf %14, %15 : vector<8x128xf32>
    %17 = arith.addf %11, %16 : vector<8x128xf32>
    %18 = vector.extract_strided_slice %0 {offsets = [0, 2], sizes = [8, 1], strides = [1, 1]} : vector<8x3xf32> to vector<8x1xf32>
    %19 = vector.extract_strided_slice %1 {offsets = [2, 0], sizes = [1, 128], strides = [1, 1]} : vector<4x128xf32> to vector<1x128xf32>
    %20 = vector.broadcast %18 : vector<8x1xf32> to vector<8x128xf32>
    %21 = vector.broadcast %19 : vector<1x128xf32> to vector<8x128xf32>
    %22 = arith.mulf %20, %21 : vector<8x128xf32>
    %23 = arith.addf %17, %22 : vector<8x128xf32>
    %cst = arith.constant 0.000000e+00 : f32
    %24 = vector.broadcast %cst : f32 to vector<8x128xf32>
    %25 = arith.maximumf %23, %24 : vector<8x128xf32>
    %26 = vector.extract_strided_slice %2 {offsets = [0, 0], sizes = [128, 2], strides = [1, 1]} : vector<129x2xf32> to vector<128x2xf32>
    %cst_5 = arith.constant dense<0.000000e+00> : vector<8x2xf32>
    %27 = tpu.matmul %25, %26, %cst_5 {dimension_numbers = #tpu.dot_dimension_numbers<[1], [0], [0], [1], [0, 0, 1, 1], [], []>} : vector<8x128xf32>, vector<128x2xf32>, vector<8x2xf32> -> vector<8x2xf32>
    %28 = vector.extract_strided_slice %2 {offsets = [128, 0], sizes = [1, 2], strides = [1, 1]} : vector<129x2xf32> to vector<1x2xf32>
    %29 = vector.broadcast %28 : vector<1x2xf32> to vector<8x2xf32>
    %30 = arith.addf %27, %29 : vector<8x2xf32>
    %31 = tpu.iota {dimensions = array<i32: 1>} : vector<8x2xi32>
    %32 = math.tanh %30 : vector<8x2xf32>
    %cst_6 = arith.constant 2.000000e+00 : f32
    %33 = vector.broadcast %cst_6 : f32 to vector<8x2xf32>
    %34 = arith.mulf %33, %32 : vector<8x2xf32>
    %cst_7 = arith.constant 0.000000e+00 : f32
    %35 = vector.broadcast %cst_7 : f32 to vector<8x2xf32>
    %36 = arith.maximumf %30, %35 : vector<8x2xf32>
    %37 = math.absf %30 : vector<8x2xf32>
    %cst_8 = arith.constant 0.000000e+00 : f32
    %38 = vector.broadcast %cst_8 : f32 to vector<8x2xf32>
    %39 = arith.subf %38, %37 : vector<8x2xf32>
    %40 = math.exp %39 : vector<8x2xf32>
    %41 = math.log1p %40 : vector<8x2xf32>
    %42 = arith.addf %36, %41 : vector<8x2xf32>
    %c1_i32 = arith.constant 1 : i32
    %43 = vector.broadcast %c1_i32 : i32 to vector<8x2xi32>
    %44 = arith.cmpi slt, %31, %43 : vector<8x2xi32>
    %45 = arith.select %44, %34, %42 : vector<8x2xi1>, vector<8x2xf32>
    %c0_9 = arith.constant 0 : index
    %c0_10 = arith.constant 0 : index
    %46 = vector.load %arg4[%c0_9, %c0_10] : memref<8x2xf32, #tpu.memory_space<vmem>>, vector<8x2xf32>
    tpu.vector_store %arg4[%c0_9, %c0_10], %45 {strides = array<i32>} : memref<8x2xf32, #tpu.memory_space<vmem>>, vector<8x2xf32>,
    return
  }
  func.func @transform_0(%arg0: i32) -> (i32, i32) {
    %c0_i32 = arith.constant 0 : i32
    %c0_i32_0 = arith.constant 0 : i32
    return %arg0, %c0_i32 : i32, i32
  }
  func.func @transform_1(%arg0: i32) -> (i32, i32) {
    %c0_i32 = arith.constant 0 : i32
    %c0_i32_0 = arith.constant 0 : i32
    %c0_i32_1 = arith.constant 0 : i32
    return %c0_i32, %c0_i32_0 : i32, i32
  }
  func.func @transform_2(%arg0: i32) -> (i32, i32) {
    %c0_i32 = arith.constant 0 : i32
    %c0_i32_0 = arith.constant 0 : i32
    %c0_i32_1 = arith.constant 0 : i32
    return %c0_i32, %c0_i32_0 : i32, i32
  }
  func.func @transform_3(%arg0: i32) -> (i32, i32) {
    %c0_i32 = arith.constant 0 : i32
    %c0_i32_0 = arith.constant 0 : i32
    return %arg0, %c0_i32 : i32, i32
  }
}

</mosaic_0001>

<llo_original>
// kernel: tpu_custom_call.1
$region0: #{tpu_custom_call.1}
  #allocation0 [shape = 'u32[]', space=smem, size = 0x4, offset = 0x4, fixed_abs, tag = 'smem constant byte address 0x4 - core index']
  #allocation1 [shape = 'u32[72,128]{1,0:T(1,128)}', space=vmem, size = 0x9000, scoped, tag = 'internal scratch']
  %s0 = inlined_call_operand.vmem [shape: f32[8,3], index: 0, kind: input, shape index: {}]
  %s1 = inlined_call_operand.vmem [shape: f32[4,128], index: 1, kind: input, shape index: {}]
  %s2 = inlined_call_operand.vmem [shape: f32[129,2], index: 2, kind: input, shape index: {}]
  %s3 = inlined_call_operand.vmem [shape: f32[8,2], index: 3, kind: output, shape index: {}]
  %s4 = sld [smem:[#allocation0]]
  $region22: #{tpu_custom_call.1} parent=0
    _
  %s6 = ssub.s32 1, %s4
  %s7 = scalar_select 0, %s6, %s4
  // Predicated region
  $region2: #{tpu_custom_call.1} parent=0 // pred_check
    _
  $region3: #{tpu_custom_call.1} parent=0 // pred_check_branch
    %9 = sbr.rel (0) target = $region5
  $region4: #{tpu_custom_call.1} parent=0 // pred_region
    _
  $region5: #{tpu_custom_call.1} parent=0 // pred_fallthru
    _
  // Predicated region
  $region6: #{tpu_custom_call.1} parent=0 // pred_check
    _
  $region7: #{tpu_custom_call.1} parent=0 // pred_check_branch
    %11 = sbr.rel (0) target = $region9
  $region8: #{tpu_custom_call.1} parent=0 // pred_region
    _
  $region9: #{tpu_custom_call.1} parent=0 // pred_fallthru
    _
  // Predicated region
  $region10: #{tpu_custom_call.1} parent=0 // pred_check
    _
  $region11: #{tpu_custom_call.1} parent=0 // pred_check_branch
    %13 = sbr.rel (0) target = $region13
  $region12: #{tpu_custom_call.1} parent=0 // pred_region
    _
  $region13: #{tpu_custom_call.1} parent=0 // pred_fallthru
    _
  %v14 = vld [vmem:[%s0] sm:$0xff]
  %v15 = vld [vmem:[%s1] sm:$0xf]
  %v16 = vld [vmem:[%s2] sm:$0xff]
  %v17 = vld [vmem:[%s2 + $0x8] sm:$0xff]
  %v18 = vld [vmem:[%s2 + $0x10] sm:$0xff]
  %v19 = vld [vmem:[%s2 + $0x18] sm:$0xff]
  %v20 = vld [vmem:[%s2 + $0x20] sm:$0xff]
  %v21 = vld [vmem:[%s2 + $0x28] sm:$0xff]
  %v22 = vld [vmem:[%s2 + $0x30] sm:$0xff]
  %v23 = vld [vmem:[%s2 + $0x38] sm:$0xff]
  %v24 = vld [vmem:[%s2 + $0x40] sm:$0xff]
  %v25 = vld [vmem:[%s2 + $0x48] sm:$0xff]
  %v26 = vld [vmem:[%s2 + $0x50] sm:$0xff]
  %v27 = vld [vmem:[%s2 + $0x58] sm:$0xff]
  %v28 = vld [vmem:[%s2 + $0x60] sm:$0xff]
  %v29 = vld [vmem:[%s2 + $0x68] sm:$0xff]
  %v30 = vld [vmem:[%s2 + $0x70] sm:$0xff]
  %v31 = vld [vmem:[%s2 + $0x78] sm:$0xff]
  %v32 = vld [vmem:[%s2 + $0x80] sm:$0x1]
  %v33 = vperm.slane %v15, 3
  %35 = vset.pattern.permute.xlu0 0
  %36 = vperm.xlu0 %35, %v14
  %v37 = vpop.permute.xlu0 %36
  %v39 = vperm.slane %v15, 0
  %v40 = vmul.f32 %v37, %v39
  %v41 = vadd.f32 %v33, %v40
  %42 = vset.pattern.permute.xlu0 1
  %43 = vperm.xlu0 %42, %v14
  %v44 = vpop.permute.xlu0 %43
  %v46 = vperm.slane %v15, 1
  %v47 = vmul.f32 %v44, %v46
  %v48 = vadd.f32 %v41, %v47
  %49 = vset.pattern.permute.xlu0 2
  %50 = vperm.xlu0 %49, %v14
  %v51 = vpop.permute.xlu0 %50
  %v53 = vperm.slane %v15, 2
  %v54 = vmul.f32 %v51, %v53
  %v55 = vadd.f32 %v48, %v54
  %v56 = vmax.f32 %v55, 0.0
  %v57 = vperm.slane %v32, 0
  %58 = vmatpush.msra.mxu0 %v31
  %59 = vmatpush.msra.mxu0 %v30
  %60 = vmatpush.msra.mxu0 %v29
  %61 = vmatpush.msra.mxu0 %v28
  %62 = vmatpush.msra.mxu0 %v27
  %63 = vmatpush.msra.mxu0 %v26
  %64 = vmatpush.msra.mxu0 %v25
  %65 = vmatpush.msra.mxu0 %v24
  %66 = vmatpush.msra.mxu0 %v23
  %67 = vmatpush.msra.mxu0 %v22
  %68 = vmatpush.msra.mxu0 %v21
  %69 = vmatpush.msra.mxu0 %v20
  %70 = vmatpush.msra.mxu0 %v19
  %71 = vmatpush.msra.mxu0 %v18
  %72 = vmatpush.msra.mxu0 %v17
  %73 = vmatpush.msra.mxu0 %v16
  %74 = vmatmul.f32.gmra.mxu0 %v56
  %v75 = vpop.f32.mrf.mxu0
  %v76 = vadd.f32 %v57, %v75
  %77 = vdwg.mxu0
  %v78 = vlaneseq
  %v79 = vand.u32 %v78, 127
  %v80 = vtanh.pop %v76
  %v81 = vmul.f32 %v80, 2.0
  %v82 = vmax.f32 %v76, 0.0
  %v83 = vand.u32 2147483647, %v76
  %v84 = vsub.f32 0.0, %v83
  %v85 = vmul.f32 %v84, 1.442695
  %v86 = vpow.pop %v85
  %v87 = vadd.f32 %v86, 1.0
  %v88 = vlog2.pop %v87
  %v89 = vmul.f32 %v88, 0.6931472
  %v90 = vmul.f32 -0.5, %v86
  %v91 = vadd.f32 %v90, 1.0
  %v92 = vmul.f32 %v91, %v86
  %v93 = vand.u32 2147483647, %v86
  %vm94 = vcmp.lt.f32.partialorder %v93, 0.0004427343
  %v95 = vsel %vm94, %v92, %v89
  %v96 = vadd.f32 %v82, %v95
  %vm97 = vcmp.lt.s32.totalorder %v79, 1
  %v98 = vsel %vm97, %v81, %v96
  %vm99 = vcmask 15360
  %100 = vst.msk [vmem:[%s3] sm:$0xff] %vm99, %v98
  // Predicated region
  $region14: #{tpu_custom_call.1} parent=0 // pred_check
    _
  $region15: #{tpu_custom_call.1} parent=0 // pred_check_branch
    %102 = sbr.rel (0) target = $region17
  $region16: #{tpu_custom_call.1} parent=0 // pred_region
    _
  $region17: #{tpu_custom_call.1} parent=0 // pred_fallthru
    _
  // Predicated region
  $region18: #{tpu_custom_call.1} parent=0 // pred_check
    _
  $region19: #{tpu_custom_call.1} parent=0 // pred_check_branch
    %104 = sbr.rel (0) target = $region21
  $region20: #{tpu_custom_call.1} parent=0 // pred_region
    _
  $region21: #{tpu_custom_call.1} parent=0 // pred_fallthru
    _

</llo_original>
